<compile_context>
chip_gen: v6e
topology: v6e:2x2x1
jax: 0.10.0
libtpu: 0.0.40
codegen_flags: <defaults>
</compile_context>

<pallas_src>
import jax
import jax.numpy as jnp
from jax.experimental import pallas as pl
from jax.experimental.pallas import tpu as pltpu

BN_EPS = 1e-5

INPUT_DIM = 32
OUTPUT_DIM = 4
HIDDEN = [256, 128, 64, 32, 16]
BATCH = 8

OUT_PAD = 128          # lane-dense padding of the fused final layer output
W_PAD = 256            # lane width of the packed weight / vector buffers

# Layer dims after fusing linear5 + out_linear (final layer lane-padded).
FUSED_DIMS = [
    (INPUT_DIM, HIDDEN[0]),   # linear1: 32 -> 256
    (HIDDEN[0], HIDDEN[1]),   # linear2: 256 -> 128
    (HIDDEN[1], HIDDEN[2]),   # linear3: 128 -> 64
    (HIDDEN[2], HIDDEN[3]),   # linear4: 64 -> 32
    (HIDDEN[3], OUT_PAD),     # fused linear5+out: 32 -> 4, padded to 128 lanes
]

# Row offsets of each weight block inside the packed [W_ROWS_TOTAL, W_PAD] buffer.
W_ROW_OFFS = []
_off = 0
for _d_in, _ in FUSED_DIMS:
    W_ROW_OFFS.append(_off)
    _off += _d_in
W_ROWS_TOTAL = _off            # = 512 (multiple of 8)

# Row indices of each vector inside the packed [V_ROWS, W_PAD] buffer.
B_ROW = [0, 1, 2, 3, 4]        # b1..b4, fused b56 (lane-padded)
G_ROW = [5, 6, 7, 8]           # bn gamma 1..4
BE_ROW = [9, 10, 11, 12]       # bn beta 1..4
V_ROWS = 16                    # pad 13 -> 16 rows (sublane multiple of 8)


def mlp_kernel(x_ref, w_ref, v_ref, o_ref):
    def weight(i):
        r0 = W_ROW_OFFS[i]
        d_in, d_out = FUSED_DIMS[i]
        return w_ref[r0:r0 + d_in, 0:d_out]

    def vec(row, d):
        return v_ref[row:row + 1, 0:d]          # [1, d] row, broadcasts over batch

    def linear(h, i):
        _, d_out = FUSED_DIMS[i]
        return (jnp.dot(h, weight(i), preferred_element_type=jnp.float32)
                + vec(B_ROW[i], d_out))

    def batchnorm(h, bn_idx):
        # Training-mode BatchNorm1d in scale/shift form:
        #   scale = rsqrt(var + eps) * gamma   (computed on a [1, d] row)
        #   shift = beta - mean * scale
        #   out   = h * scale + shift          (2 VPU ops per element)
        d = HIDDEN[bn_idx]
        mean = jnp.mean(h, axis=0, keepdims=True)
        c = h - mean
        var = jnp.mean(c * c, axis=0, keepdims=True)     # biased variance
        scale = jax.lax.rsqrt(var + BN_EPS) * vec(G_ROW[bn_idx], d)
        shift = vec(BE_ROW[bn_idx], d) - mean * scale
        return h * scale + shift

    h = x_ref[...]

    h = jnp.maximum(linear(h, 0), 0.0)   # linear1 + relu; dropout(p=0.0) is identity
    h = batchnorm(h, 0)

    h = jnp.maximum(linear(h, 1), 0.0)
    h = batchnorm(h, 1)

    h = jnp.maximum(linear(h, 2), 0.0)
    h = batchnorm(h, 2)

    h = jnp.maximum(linear(h, 3), 0.0)
    h = batchnorm(h, 3)

    # Fused linear5 + out_linear; columns 4..127 are zero (lane-dense store).
    o_ref[...] = linear(h, 4)


def mlp_forward(x, wbuf, vbuf):
    batch = x.shape[0]
    flops = 2 * batch * sum(d_in * d_out for d_in, d_out in FUSED_DIMS)
    bytes_accessed = 4 * (x.size + wbuf.size + vbuf.size + batch * OUT_PAD)
    out = pl.pallas_call(
        mlp_kernel,
        out_shape=jax.ShapeDtypeStruct((batch, OUT_PAD), jnp.float32),
        in_specs=[pl.BlockSpec(memory_space=pltpu.MemorySpace.VMEM)] * 3,
        out_specs=pl.BlockSpec(memory_space=pltpu.MemorySpace.VMEM),
        cost_estimate=pl.CostEstimate(
            flops=flops,
            transcendentals=sum(HIDDEN[:4]),      # one rsqrt per BN feature
            bytes_accessed=bytes_accessed),
    )(x, wbuf, vbuf)
    return out[:, :OUTPUT_DIM]


def init_params(key):
    """Deterministic synthetic parameters in the original (unfused) layout."""
    dims = [INPUT_DIM] + HIDDEN + [OUTPUT_DIM]
    params = []
    # 6 linear layers: weights stored [in, out], biases [1, out]
    for i in range(6):
        d_in, d_out = dims[i], dims[i + 1]
        key, kw, kb = jax.random.split(key, 3)
        w = jax.random.normal(kw, (d_in, d_out), jnp.float32) * (1.0 / jnp.sqrt(d_in))
        b = jax.random.normal(kb, (1, d_out), jnp.float32) * 0.01
        params += [w, b]
    # 4 batchnorm layers: gamma [1, d], beta [1, d]
    for d in HIDDEN[:4]:
        key, kg, kbe = jax.random.split(key, 3)
        g = 1.0 + 0.1 * jax.random.normal(kg, (1, d), jnp.float32)
        be = 0.1 * jax.random.normal(kbe, (1, d), jnp.float32)
        params += [g, be]
    return params


def pack_params(params):
    """Host-side: fuse linear5+out_linear and pack everything into 2 buffers."""
    (w1, b1, w2, b2, w3, b3, w4, b4, w5, b5, w6, b6,
     g1, be1, g2, be2, g3, be3, g4, be4) = params

    hi = jax.lax.Precision.HIGHEST
    w56 = jnp.dot(w5, w6, precision=hi)              # [16->4 fused: 32, 4]
    b56 = jnp.dot(b5, w6, precision=hi) + b6          # [1, 4]
    w56p = jnp.zeros((HIDDEN[3], OUT_PAD), jnp.float32).at[:, :OUTPUT_DIM].set(w56)
    b56p = jnp.zeros((1, OUT_PAD), jnp.float32).at[:, :OUTPUT_DIM].set(b56)

    weights = [w1, w2, w3, w4, w56p]
    wbuf = jnp.zeros((W_ROWS_TOTAL, W_PAD), jnp.float32)
    for w, r0 in zip(weights, W_ROW_OFFS):
        wbuf = wbuf.at[r0:r0 + w.shape[0], :w.shape[1]].set(w)

    vecs = [b1, b2, b3, b4, b56p, g1, g2, g3, g4, be1, be2, be3, be4]
    vbuf = jnp.zeros((V_ROWS, W_PAD), jnp.float32)
    for i, v in enumerate(vecs):
        vbuf = vbuf.at[i:i + 1, :v.shape[1]].set(v)

    return wbuf, vbuf


def mlp_reference(x, params):
    """Pure-JAX reference on the original (unfused) parameters."""
    (w1, b1, w2, b2, w3, b3, w4, b4, w5, b5, w6, b6,
     g1, be1, g2, be2, g3, be3, g4, be4) = params

    def lin(h, w, b):
        return h @ w + b

    def bn(h, g, be):
        m = jnp.mean(h, axis=0, keepdims=True)
        v = jnp.mean((h - m) ** 2, axis=0, keepdims=True)
        return (h - m) / jnp.sqrt(v + BN_EPS) * g + be

    h = jnp.maximum(lin(x, w1, b1), 0.0)
    h = bn(h, g1, be1)
    h = jnp.maximum(lin(h, w2, b2), 0.0)
    h = bn(h, g2, be2)
    h = jnp.maximum(lin(h, w3, b3), 0.0)
    h = bn(h, g3, be3)
    h = jnp.maximum(lin(h, w4, b4), 0.0)
    h = bn(h, g4, be4)
    h = lin(h, w5, b5)
    return lin(h, w6, b6)


if __name__ == "__main__":
    key = jax.random.PRNGKey(0)
    key, kx = jax.random.split(key)
    x = jax.random.normal(kx, (BATCH, INPUT_DIM), jnp.float32)
    params = init_params(key)
    wbuf, vbuf = pack_params(params)

    out = mlp_forward(x, wbuf, vbuf)
    out = jax.block_until_ready(out)

    ref = mlp_reference(x, params)
    assert out.shape == (BATCH, OUTPUT_DIM)
    err = jnp.max(jnp.abs(out - ref))
    assert jnp.allclose(out, ref, atol=1e-4, rtol=1e-4), f"max abs err {err}"

    print("KERNEL_OK")
</pallas_src>

<mosaic_0001>
module attributes {stable_mosaic.version = 11 : i64} {
  func.func @mlp_kernel(%arg0: memref<8x32xf32, #tpu.memory_space<vmem>>, %arg1: memref<512x256xf32, #tpu.memory_space<vmem>>, %arg2: memref<16x256xf32, #tpu.memory_space<vmem>>, %arg3: memref<8x128xf32, #tpu.memory_space<vmem>>) attributes {dimension_semantics = [], scalar_prefetch = 0 : i64, scratch_operands = 0 : i64, tpu.core_type = #tpu.core_type<tc>} {
    %c0 = arith.constant 0 : index
    %c0_0 = arith.constant 0 : index
    %0 = vector.load %arg0[%c0, %c0_0] : memref<8x32xf32, #tpu.memory_space<vmem>>, vector<8x32xf32>
    %c0_1 = arith.constant 0 : index
    %c0_2 = arith.constant 0 : index
    %1 = vector.load %arg1[%c0_1, %c0_2] : memref<512x256xf32, #tpu.memory_space<vmem>>, vector<32x256xf32>
    %cst = arith.constant dense<0.000000e+00> : vector<8x256xf32>
    %2 = tpu.matmul %0, %1, %cst {dimension_numbers = #tpu.dot_dimension_numbers<[1], [0], [0], [1], [0, 0, 1, 1], [], []>} : vector<8x32xf32>, vector<32x256xf32>, vector<8x256xf32> -> vector<8x256xf32>
    %c0_3 = arith.constant 0 : index
    %c0_4 = arith.constant 0 : index
    %3 = vector.load %arg2[%c0_3, %c0_4] : memref<16x256xf32, #tpu.memory_space<vmem>>, vector<1x256xf32>
    %4 = vector.broadcast %3 : vector<1x256xf32> to vector<8x256xf32>
    %5 = arith.addf %2, %4 : vector<8x256xf32>
    %cst_5 = arith.constant 0.000000e+00 : f32
    %6 = vector.broadcast %cst_5 : f32 to vector<8x256xf32>
    %7 = arith.maximumf %5, %6 : vector<8x256xf32>
    %cst_6 = arith.constant dense<0.000000e+00> : vector<256xf32>
    %8 = vector.multi_reduction <add>, %7, %cst_6 [0] : vector<8x256xf32> to vector<256xf32>
    %9 = vector.shape_cast %8 : vector<256xf32> to vector<1x256xf32>
    %cst_7 = arith.constant 8.000000e+00 : f32
    %10 = vector.broadcast %cst_7 : f32 to vector<1x256xf32>
    %11 = arith.divf %9, %10 : vector<1x256xf32>
    %12 = vector.broadcast %11 : vector<1x256xf32> to vector<8x256xf32>
    %13 = arith.subf %7, %12 : vector<8x256xf32>
    %14 = arith.mulf %13, %13 : vector<8x256xf32>
    %cst_8 = arith.constant dense<0.000000e+00> : vector<256xf32>
    %15 = vector.multi_reduction <add>, %14, %cst_8 [0] : vector<8x256xf32> to vector<256xf32>
    %16 = vector.shape_cast %15 : vector<256xf32> to vector<1x256xf32>
    %cst_9 = arith.constant 8.000000e+00 : f32
    %17 = vector.broadcast %cst_9 : f32 to vector<1x256xf32>
    %18 = arith.divf %16, %17 : vector<1x256xf32>
    %cst_10 = arith.constant 9.99999974E-6 : f32
    %19 = vector.broadcast %cst_10 : f32 to vector<1x256xf32>
    %20 = arith.addf %18, %19 : vector<1x256xf32>
    %21 = math.rsqrt %20 : vector<1x256xf32>
    %c5 = arith.constant 5 : index
    %c0_11 = arith.constant 0 : index
    %22 = vector.load %arg2[%c5, %c0_11] : memref<16x256xf32, #tpu.memory_space<vmem>>, vector<1x256xf32>
    %23 = arith.mulf %21, %22 : vector<1x256xf32>
    %c9 = arith.constant 9 : index
    %c0_12 = arith.constant 0 : index
    %24 = vector.load %arg2[%c9, %c0_12] : memref<16x256xf32, #tpu.memory_space<vmem>>, vector<1x256xf32>
    %25 = arith.mulf %11, %23 : vector<1x256xf32>
    %26 = arith.subf %24, %25 : vector<1x256xf32>
    %27 = vector.broadcast %23 : vector<1x256xf32> to vector<8x256xf32>
    %28 = arith.mulf %7, %27 : vector<8x256xf32>
    %29 = vector.broadcast %26 : vector<1x256xf32> to vector<8x256xf32>
    %30 = arith.addf %28, %29 : vector<8x256xf32>
    %c32 = arith.constant 32 : index
    %c0_13 = arith.constant 0 : index
    %31 = vector.load %arg1[%c32, %c0_13] : memref<512x256xf32, #tpu.memory_space<vmem>>, vector<256x128xf32>
    %cst_14 = arith.constant dense<0.000000e+00> : vector<8x128xf32>
    %32 = tpu.matmul %30, %31, %cst_14 {dimension_numbers = #tpu.dot_dimension_numbers<[1], [0], [0], [1], [0, 0, 1, 1], [], []>} : vector<8x256xf32>, vector<256x128xf32>, vector<8x128xf32> -> vector<8x128xf32>
    %c1 = arith.constant 1 : index
    %c0_15 = arith.constant 0 : index
    %33 = vector.load %arg2[%c1, %c0_15] : memref<16x256xf32, #tpu.memory_space<vmem>>, vector<1x128xf32>
    %34 = vector.broadcast %33 : vector<1x128xf32> to vector<8x128xf32>
    %35 = arith.addf %32, %34 : vector<8x128xf32>
    %cst_16 = arith.constant 0.000000e+00 : f32
    %36 = vector.broadcast %cst_16 : f32 to vector<8x128xf32>
    %37 = arith.maximumf %35, %36 : vector<8x128xf32>
    %cst_17 = arith.constant dense<0.000000e+00> : vector<128xf32>
    %38 = vector.multi_reduction <add>, %37, %cst_17 [0] : vector<8x128xf32> to vector<128xf32>
    %39 = vector.shape_cast %38 : vector<128xf32> to vector<1x128xf32>
    %cst_18 = arith.constant 8.000000e+00 : f32
    %40 = vector.broadcast %cst_18 : f32 to vector<1x128xf32>
    %41 = arith.divf %39, %40 : vector<1x128xf32>
    %42 = vector.broadcast %41 : vector<1x128xf32> to vector<8x128xf32>
    %43 = arith.subf %37, %42 : vector<8x128xf32>
    %44 = arith.mulf %43, %43 : vector<8x128xf32>
    %cst_19 = arith.constant dense<0.000000e+00> : vector<128xf32>
    %45 = vector.multi_reduction <add>, %44, %cst_19 [0] : vector<8x128xf32> to vector<128xf32>
    %46 = vector.shape_cast %45 : vector<128xf32> to vector<1x128xf32>
    %cst_20 = arith.constant 8.000000e+00 : f32
    %47 = vector.broadcast %cst_20 : f32 to vector<1x128xf32>
    %48 = arith.divf %46, %47 : vector<1x128xf32>
    %cst_21 = arith.constant 9.99999974E-6 : f32
    %49 = vector.broadcast %cst_21 : f32 to vector<1x128xf32>
    %50 = arith.addf %48, %49 : vector<1x128xf32>
    %51 = math.rsqrt %50 : vector<1x128xf32>
    %c6 = arith.constant 6 : index
    %c0_22 = arith.constant 0 : index
    %52 = vector.load %arg2[%c6, %c0_22] : memref<16x256xf32, #tpu.memory_space<vmem>>, vector<1x128xf32>
    %53 = arith.mulf %51, %52 : vector<1x128xf32>
    %c10 = arith.constant 10 : index
    %c0_23 = arith.constant 0 : index
    %54 = vector.load %arg2[%c10, %c0_23] : memref<16x256xf32, #tpu.memory_space<vmem>>, vector<1x128xf32>
    %55 = arith.mulf %41, %53 : vector<1x128xf32>
    %56 = arith.subf %54, %55 : vector<1x128xf32>
    %57 = vector.broadcast %53 : vector<1x128xf32> to vector<8x128xf32>
    %58 = arith.mulf %37, %57 : vector<8x128xf32>
    %59 = vector.broadcast %56 : vector<1x128xf32> to vector<8x128xf32>
    %60 = arith.addf %58, %59 : vector<8x128xf32>
    %c288 = arith.constant 288 : index
    %c0_24 = arith.constant 0 : index
    %61 = vector.load %arg1[%c288, %c0_24] : memref<512x256xf32, #tpu.memory_space<vmem>>, vector<128x64xf32>
    %cst_25 = arith.constant dense<0.000000e+00> : vector<8x64xf32>
    %62 = tpu.matmul %60, %61, %cst_25 {dimension_numbers = #tpu.dot_dimension_numbers<[1], [0], [0], [1], [0, 0, 1, 1], [], []>} : vector<8x128xf32>, vector<128x64xf32>, vector<8x64xf32> -> vector<8x64xf32>
    %c2 = arith.constant 2 : index
    %c0_26 = arith.constant 0 : index
    %63 = vector.load %arg2[%c2, %c0_26] : memref<16x256xf32, #tpu.memory_space<vmem>>, vector<1x64xf32>
    %64 = vector.broadcast %63 : vector<1x64xf32> to vector<8x64xf32>
    %65 = arith.addf %62, %64 : vector<8x64xf32>
    %cst_27 = arith.constant 0.000000e+00 : f32
    %66 = vector.broadcast %cst_27 : f32 to vector<8x64xf32>
    %67 = arith.maximumf %65, %66 : vector<8x64xf32>
    %cst_28 = arith.constant dense<0.000000e+00> : vector<64xf32>
    %68 = vector.multi_reduction <add>, %67, %cst_28 [0] : vector<8x64xf32> to vector<64xf32>
    %69 = vector.shape_cast %68 : vector<64xf32> to vector<1x64xf32>
    %cst_29 = arith.constant 8.000000e+00 : f32
    %70 = vector.broadcast %cst_29 : f32 to vector<1x64xf32>
    %71 = arith.divf %69, %70 : vector<1x64xf32>
    %72 = vector.broadcast %71 : vector<1x64xf32> to vector<8x64xf32>
    %73 = arith.subf %67, %72 : vector<8x64xf32>
    %74 = arith.mulf %73, %73 : vector<8x64xf32>
    %cst_30 = arith.constant dense<0.000000e+00> : vector<64xf32>
    %75 = vector.multi_reduction <add>, %74, %cst_30 [0] : vector<8x64xf32> to vector<64xf32>
    %76 = vector.shape_cast %75 : vector<64xf32> to vector<1x64xf32>
    %cst_31 = arith.constant 8.000000e+00 : f32
    %77 = vector.broadcast %cst_31 : f32 to vector<1x64xf32>
    %78 = arith.divf %76, %77 : vector<1x64xf32>
    %cst_32 = arith.constant 9.99999974E-6 : f32
    %79 = vector.broadcast %cst_32 : f32 to vector<1x64xf32>
    %80 = arith.addf %78, %79 : vector<1x64xf32>
    %81 = math.rsqrt %80 : vector<1x64xf32>
    %c7 = arith.constant 7 : index
    %c0_33 = arith.constant 0 : index
    %82 = vector.load %arg2[%c7, %c0_33] : memref<16x256xf32, #tpu.memory_space<vmem>>, vector<1x64xf32>
    %83 = arith.mulf %81, %82 : vector<1x64xf32>
    %c11 = arith.constant 11 : index
    %c0_34 = arith.constant 0 : index
    %84 = vector.load %arg2[%c11, %c0_34] : memref<16x256xf32, #tpu.memory_space<vmem>>, vector<1x64xf32>
    %85 = arith.mulf %71, %83 : vector<1x64xf32>
    %86 = arith.subf %84, %85 : vector<1x64xf32>
    %87 = vector.broadcast %83 : vector<1x64xf32> to vector<8x64xf32>
    %88 = arith.mulf %67, %87 : vector<8x64xf32>
    %89 = vector.broadcast %86 : vector<1x64xf32> to vector<8x64xf32>
    %90 = arith.addf %88, %89 : vector<8x64xf32>
    %c416 = arith.constant 416 : index
    %c0_35 = arith.constant 0 : index
    %91 = vector.load %arg1[%c416, %c0_35] : memref<512x256xf32, #tpu.memory_space<vmem>>, vector<64x32xf32>
    %cst_36 = arith.constant dense<0.000000e+00> : vector<8x32xf32>
    %92 = tpu.matmul %90, %91, %cst_36 {dimension_numbers = #tpu.dot_dimension_numbers<[1], [0], [0], [1], [0, 0, 1, 1], [], []>} : vector<8x64xf32>, vector<64x32xf32>, vector<8x32xf32> -> vector<8x32xf32>
    %c3 = arith.constant 3 : index
    %c0_37 = arith.constant 0 : index
    %93 = vector.load %arg2[%c3, %c0_37] : memref<16x256xf32, #tpu.memory_space<vmem>>, vector<1x32xf32>
    %94 = vector.broadcast %93 : vector<1x32xf32> to vector<8x32xf32>
    %95 = arith.addf %92, %94 : vector<8x32xf32>
    %cst_38 = arith.constant 0.000000e+00 : f32
    %96 = vector.broadcast %cst_38 : f32 to vector<8x32xf32>
    %97 = arith.maximumf %95, %96 : vector<8x32xf32>
    %cst_39 = arith.constant dense<0.000000e+00> : vector<32xf32>
    %98 = vector.multi_reduction <add>, %97, %cst_39 [0] : vector<8x32xf32> to vector<32xf32>
    %99 = vector.shape_cast %98 : vector<32xf32> to vector<1x32xf32>
    %cst_40 = arith.constant 8.000000e+00 : f32
    %100 = vector.broadcast %cst_40 : f32 to vector<1x32xf32>
    %101 = arith.divf %99, %100 : vector<1x32xf32>
    %102 = vector.broadcast %101 : vector<1x32xf32> to vector<8x32xf32>
    %103 = arith.subf %97, %102 : vector<8x32xf32>
    %104 = arith.mulf %103, %103 : vector<8x32xf32>
    %cst_41 = arith.constant dense<0.000000e+00> : vector<32xf32>
    %105 = vector.multi_reduction <add>, %104, %cst_41 [0] : vector<8x32xf32> to vector<32xf32>
    %106 = vector.shape_cast %105 : vector<32xf32> to vector<1x32xf32>
    %cst_42 = arith.constant 8.000000e+00 : f32
    %107 = vector.broadcast %cst_42 : f32 to vector<1x32xf32>
    %108 = arith.divf %106, %107 : vector<1x32xf32>
    %cst_43 = arith.constant 9.99999974E-6 : f32
    %109 = vector.broadcast %cst_43 : f32 to vector<1x32xf32>
    %110 = arith.addf %108, %109 : vector<1x32xf32>
    %111 = math.rsqrt %110 : vector<1x32xf32>
    %c8 = arith.constant 8 : index
    %c0_44 = arith.constant 0 : index
    %112 = vector.load %arg2[%c8, %c0_44] : memref<16x256xf32, #tpu.memory_space<vmem>>, vector<1x32xf32>
    %113 = arith.mulf %111, %112 : vector<1x32xf32>
    %c12 = arith.constant 12 : index
    %c0_45 = arith.constant 0 : index
    %114 = vector.load %arg2[%c12, %c0_45] : memref<16x256xf32, #tpu.memory_space<vmem>>, vector<1x32xf32>
    %115 = arith.mulf %101, %113 : vector<1x32xf32>
    %116 = arith.subf %114, %115 : vector<1x32xf32>
    %117 = vector.broadcast %113 : vector<1x32xf32> to vector<8x32xf32>
    %118 = arith.mulf %97, %117 : vector<8x32xf32>
    %119 = vector.broadcast %116 : vector<1x32xf32> to vector<8x32xf32>
    %120 = arith.addf %118, %119 : vector<8x32xf32>
    %c480 = arith.constant 480 : index
    %c0_46 = arith.constant 0 : index
    %121 = vector.load %arg1[%c480, %c0_46] : memref<512x256xf32, #tpu.memory_space<vmem>>, vector<32x128xf32>
    %cst_47 = arith.constant dense<0.000000e+00> : vector<8x128xf32>
    %122 = tpu.matmul %120, %121, %cst_47 {dimension_numbers = #tpu.dot_dimension_numbers<[1], [0], [0], [1], [0, 0, 1, 1], [], []>} : vector<8x32xf32>, vector<32x128xf32>, vector<8x128xf32> -> vector<8x128xf32>
    %c4 = arith.constant 4 : index
    %c0_48 = arith.constant 0 : index
    %123 = vector.load %arg2[%c4, %c0_48] : memref<16x256xf32, #tpu.memory_space<vmem>>, vector<1x128xf32>
    %124 = vector.broadcast %123 : vector<1x128xf32> to vector<8x128xf32>
    %125 = arith.addf %122, %124 : vector<8x128xf32>
    %c0_49 = arith.constant 0 : index
    %c0_50 = arith.constant 0 : index
    %126 = vector.load %arg3[%c0_49, %c0_50] : memref<8x128xf32, #tpu.memory_space<vmem>>, vector<8x128xf32>
    tpu.vector_store %arg3[%c0_49, %c0_50], %125 {strides = array<i32>} : memref<8x128xf32, #tpu.memory_space<vmem>>, vector<8x128xf32>,
    return
  }
}

</mosaic_0001>

<llo_original>
// kernel: tpu_custom_call.1
$region0: #{tpu_custom_call.1}
  #allocation0 [shape = 'u32[]', space=smem, size = 0x4, offset = 0x4, fixed_abs, tag = 'smem constant byte address 0x4 - core index']
  #allocation1 [shape = 'u32[144,128]{1,0:T(1,128)}', space=vmem, size = 0x12000, scoped, tag = 'internal scratch']
  %s0 = inlined_call_operand.hbm [shape: f32[8,32], index: 0, kind: input, shape index: {}]
  %s1 = inlined_call_operand.hbm [shape: f32[512,256], index: 1, kind: input, shape index: {}]
  %s2 = inlined_call_operand.hbm [shape: f32[16,256], index: 2, kind: input, shape index: {}]
  %s3 = inlined_call_operand.hbm [shape: f32[8,128], index: 3, kind: output, shape index: {}]
  %s4 = sld [smem:[#allocation0]]
  $region34: #{tpu_custom_call.1} parent=0
    _
  %s6 = ssub.s32 1, %s4
  %s7 = scalar_select 0, %s6, %s4
  $region1: #{tpu_custom_call.1} parent=0
    #allocation2 [shape = 'u8[4096]{0}', space=vmem, size = 0x1000, scoped, tag = 'input window, operand 0, single buffered']
    #allocation3 [shape = 's32[1]{0}', space=sflag, size = 0x4, scoped, tag = 'scoped memory for tpu_custom_call.1']
    #allocation4 [shape = 's32[1]{0}', space=sflag, size = 0x4, scoped, tag = 'scoped memory for tpu_custom_call.1']
    #allocation5 [shape = 'u8[524288]{0}', space=vmem, size = 0x80000, scoped, tag = 'input window, operand 1, single buffered']
    #allocation6 [shape = 's32[1]{0}', space=sflag, size = 0x4, scoped, tag = 'scoped memory for tpu_custom_call.1']
    #allocation7 [shape = 'u8[16384]{0}', space=vmem, size = 0x4000, scoped, tag = 'input window, operand 2, single buffered']
    #allocation8 [shape = 'u8[4096]{0}', space=vmem, size = 0x1000, scoped, tag = 'output window, operand 0, single buffered']
    %8 = vsyncpa [#allocation3], 0
    %9 = vsyncpa [#allocation6], 0
    %10 = vsyncpa [#allocation4], 0
    // Predicated region
    $region2: #{tpu_custom_call.1} parent=1 // pred_check
      _
    $region3: #{tpu_custom_call.1} parent=1 // pred_check_branch
      %12 = sbr.rel (0) target = $region5
    $region4: #{tpu_custom_call.1} parent=1 // pred_region
      %s14 = ssub.s32 128, 128
      %15 = vsyncadd [#allocation3], %s14
      %s17 = sshll.u32 [#allocation2], 4
      %s18 = int_to_ptr.vmem [resolvable:$true] %s17
      %20 = dma.hbm_to_vmem [thread:$0]  %s0, 128, %s18, [#allocation3]
    $region5: #{tpu_custom_call.1} parent=1 // pred_fallthru
      _
    // Predicated region
    $region6: #{tpu_custom_call.1} parent=1 // pred_check
      _
    $region7: #{tpu_custom_call.1} parent=1 // pred_check_branch
      %22 = sbr.rel (0) target = $region9
    $region8: #{tpu_custom_call.1} parent=1 // pred_region
      %s24 = ssub.s32 16384, 16384
      %25 = vsyncadd [#allocation6], %s24
      %s26 = sshll.u32 [#allocation5], 4
      %s27 = int_to_ptr.vmem [resolvable:$true] %s26
      %32 = dma.hbm_to_vmem [thread:$0]  %s1, 16384, %s27, [#allocation6], 256, 256, 16
    $region9: #{tpu_custom_call.1} parent=1 // pred_fallthru
      _
    // Predicated region
    $region10: #{tpu_custom_call.1} parent=1 // pred_check
      _
    $region11: #{tpu_custom_call.1} parent=1 // pred_check_branch
      %34 = sbr.rel (0) target = $region13
    $region12: #{tpu_custom_call.1} parent=1 // pred_region
      %s36 = ssub.s32 512, 512
      %37 = vsyncadd [#allocation6], %s36
      %s38 = sshll.u32 [#allocation7], 4
      %s39 = int_to_ptr.vmem [resolvable:$true] %s38
      %44 = dma.hbm_to_vmem [thread:$0]  %s2, 512, %s39, [#allocation6], 256, 256, 16
    $region13: #{tpu_custom_call.1} parent=1 // pred_fallthru
      _
    // Predicated region
    $region14: #{tpu_custom_call.1} parent=1 // pred_check
      _
    $region15: #{tpu_custom_call.1} parent=1 // pred_check_branch
      %46 = sbr.rel (0) target = $region17
    $region16: #{tpu_custom_call.1} parent=1 // pred_region
      %47 = dma.done [#allocation3], 128
    $region17: #{tpu_custom_call.1} parent=1 // pred_fallthru
      _
    // Predicated region
    $region18: #{tpu_custom_call.1} parent=1 // pred_check
      _
    $region19: #{tpu_custom_call.1} parent=1 // pred_check_branch
      %49 = sbr.rel (0) target = $region21
    $region20: #{tpu_custom_call.1} parent=1 // pred_region
      %50 = dma.done [#allocation6], 16384
    $region21: #{tpu_custom_call.1} parent=1 // pred_fallthru
      _
    // Predicated region
    $region22: #{tpu_custom_call.1} parent=1 // pred_check
      _
    $region23: #{tpu_custom_call.1} parent=1 // pred_check_branch
      %52 = sbr.rel (0) target = $region25
    $region24: #{tpu_custom_call.1} parent=1 // pred_region
      %53 = dma.done [#allocation6], 512
    $region25: #{tpu_custom_call.1} parent=1 // pred_fallthru
      _
    %v54 = vld [vmem:[#allocation2] sm:$0xff]
    %v55 = vld [vmem:[#allocation5] sm:$0xff]
    %v56 = vld [vmem:[#allocation5 + $0x8] sm:$0xff]
    %v57 = vld [vmem:[#allocation5 + $0x10] sm:$0xff]
    %v58 = vld [vmem:[#allocation5 + $0x18] sm:$0xff]
    %v59 = vld [vmem:[#allocation5 + $0x20] sm:$0xff]
    %v60 = vld [vmem:[#allocation5 + $0x28] sm:$0xff]
    %v61 = vld [vmem:[#allocation5 + $0x30] sm:$0xff]
    %v62 = vld [vmem:[#allocation5 + $0x38] sm:$0xff]
    %v63 = vld [vmem:[#allocation7] ss:$8 sm:$0x3]
    %v65 = vlaneseq
    %v66 = vshrl.u32 %v65, 7
    %v67 = vsub.s32 0, %v66
    %v68 = vrot.slane %v63, %v67
    %v69 = vlaneseq
    %v70 = vshrl.u32 %v69, 7
    %v71 = vsub.s32 1, %v70
    %v72 = vrot.slane %v63, %v71
    %vm75 = vcmask 261120
    %v77 = vsel %vm75, %v54, 0
    %79 = vmatprep.subr.mxu0 0.0
    %80 = vmatpush1.msra.mxu0 0.0
    %81 = vmatprep.subr.mxu0 0.0
    %82 = vmatpush1.msra.mxu0 0.0
    %83 = vmatprep.subr.mxu0 0.0
    %84 = vmatpush1.msra.mxu0 0.0
    %85 = vmatprep.subr.mxu0 0.0
    %86 = vmatpush1.msra.mxu0 0.0
    %87 = vmatprep.subr.mxu0 0.0
    %88 = vmatpush1.msra.mxu0 0.0
    %89 = vmatprep.subr.mxu0 0.0
    %90 = vmatpush1.msra.mxu0 0.0
    %91 = vmatprep.subr.mxu0 0.0
    %92 = vmatpush1.msra.mxu0 0.0
    %93 = vmatprep.subr.mxu0 0.0
    %94 = vmatpush1.msra.mxu0 0.0
    %95 = vmatprep.subr.mxu0 0.0
    %96 = vmatpush1.msra.mxu0 0.0
    %97 = vmatprep.subr.mxu0 0.0
    %98 = vmatpush1.msra.mxu0 0.0
    %99 = vmatprep.subr.mxu0 0.0
    %100 = vmatpush1.msra.mxu0 0.0
    %101 = vmatprep.subr.mxu0 0.0
    %102 = vmatpush1.msra.mxu0 0.0
    %103 = vmatprep.subr.mxu0 %v62
    %104 = vmatpush1.msra.mxu0 %v61
    %105 = vmatprep.subr.mxu0 %v60
    %106 = vmatpush1.msra.mxu0 %v59
    %107 = vmatprep.subr.mxu0 %v58
    %108 = vmatpush1.msra.mxu0 %v57
    %109 = vmatprep.subr.mxu0 %v56
    %110 = vmatpush1.msra.mxu0 %v55
    %111 = vmatprep.subr.mxu0 0.0
    %112 = vmatpush2.msra.mxu0 0.0
    %113 = vmatprep.subr.mxu0 0.0
    %114 = vmatpush2.msra.mxu0 0.0
    %115 = vmatprep.subr.mxu0 0.0
    %116 = vmatpush2.msra.mxu0 0.0
    %117 = vmatprep.subr.mxu0 0.0
    %118 = vmatpush2.msra.mxu0 0.0
    %119 = vmatprep.subr.mxu0 0.0
    %120 = vmatpush2.msra.mxu0 0.0
    %121 = vmatprep.subr.mxu0 0.0
    %122 = vmatpush2.msra.mxu0 0.0
    %123 = vmatprep.subr.mxu0 0.0
    %124 = vmatpush2.msra.mxu0 0.0
    %125 = vmatprep.subr.mxu0 0.0
    %126 = vmatpush2.msra.mxu0 0.0
    %127 = vmatprep.subr.mxu0 0.0
    %128 = vmatpush2.msra.mxu0 0.0
    %129 = vmatprep.subr.mxu0 0.0
    %130 = vmatpush2.msra.mxu0 0.0
    %131 = vmatprep.subr.mxu0 0.0
    %132 = vmatpush2.msra.mxu0 0.0
    %133 = vmatprep.subr.mxu0 0.0
    %134 = vmatpush2.msra.mxu0 0.0
    %135 = vmatprep.subr.mxu0 0.0
    %136 = vmatpush2.msra.mxu0 0.0
    %137 = vmatprep.subr.mxu0 0.0
    %138 = vmatpush2.msra.mxu0 0.0
    %139 = vmatprep.subr.mxu0 0.0
    %140 = vmatpush2.msra.mxu0 0.0
    %141 = vmatprep.subr.mxu0 0.0
    %142 = vmatpush2.msra.mxu0 0.0
    %143 = vmatprep.mubr.f32.mxu0 0.0
    %144 = vmatmul.mubr.f32.gmra.mxu0 %v77
    %v145 = vpop.f32.mrf.mxu0
    %v146 = vadd.f32 %v68, %v145
    %v147 = vpop.f32.mrf.mxu0
    %v148 = vadd.f32 %v72, %v147
    %149 = vdwg.mxu0
    %v150 = vmax.f32 %v146, 0.0
    %v151 = vmax.f32 %v148, 0.0
    %v152 = vrot.slane %v150, 4
    %v153 = vadd.f32 %v150, %v152
    %v154 = vrot.slane %v153, 2
    %v155 = vadd.f32 %v153, %v154
    %v156 = vrot.slane %v155, 1
    %v157 = vadd.f32 %v155, %v156
    %v158 = vrot.slane %v151, 4
    %v159 = vadd.f32 %v151, %v158
    %v160 = vrot.slane %v159, 2
    %v161 = vadd.f32 %v159, %v160
    %v162 = vrot.slane %v161, 1
    %v163 = vadd.f32 %v161, %v162
    %v164 = vrcp.pop 8.0
    %v165 = vmul.f32 %v157, %v164
    %v166 = vmul.f32 %v163, %v164
    %v167 = vsub.f32 %v150, %v165
    %v168 = vsub.f32 %v151, %v166
    %v169 = vmul.f32 %v167, %v167
    %v170 = vmul.f32 %v168, %v168
    %v171 = vrot.slane %v169, 4
    %v172 = vadd.f32 %v169, %v171
    %v173 = vrot.slane %v172, 2
    %v174 = vadd.f32 %v172, %v173
    %v175 = vrot.slane %v174, 1
    %v176 = vadd.f32 %v174, %v175
    %v177 = vrot.slane %v170, 4
    %v178 = vadd.f32 %v170, %v177
    %v179 = vrot.slane %v178, 2
    %v180 = vadd.f32 %v178, %v179
    %v181 = vrot.slane %v180, 1
    %v182 = vadd.f32 %v180, %v181
    %v183 = vmul.f32 %v176, %v164
    %v184 = vmul.f32 %v182, %v164
    %v185 = vadd.f32 %v183, 1e-05
    %v186 = vadd.f32 %v184, 1e-05
    %v187 = vrsqrt.pop %v185
    %v188 = vrsqrt.pop %v186
    %s189 = scalar_lea.vmem [#allocation7], 5
    %v190 = vld [vmem:[%s189] ss:$8 sm:$0x3]
    %v192 = vlaneseq
    %v193 = vshrl.u32 %v192, 7
    %v194 = vsub.s32 0, %v193
    %v195 = vrot.slane %v190, %v194
    %v196 = vlaneseq
    %v197 = vshrl.u32 %v196, 7
    %v198 = vsub.s32 1, %v197
    %v199 = vrot.slane %v190, %v198
    %v202 = vmul.f32 %v187, %v195
    %v203 = vmul.f32 %v188, %v199
    %s204 = scalar_lea.vmem [#allocation7], 17
    %v205 = vld [vmem:[%s204] ss:$8 sm:$0x3]
    %v206 = vmul.f32 %v165, %v202
    %v207 = vmul.f32 %v166, %v203
    %v210 = vcombine.low %v206, %v207
    %v212 = vunpack.c.l.s4 1966171168
    %v213 = vunpack.c.0.s8 %v212
    %v214 = vlaneseq
    %v215 = vshrl.u32 %v214, 7
    %v216 = vsub.s32 %v213, %v215
    %v217 = vrot.slane %v210, %v216
    %v219 = vunpack.c.l.s4 1966171168
    %v220 = vunpack.c.0.s8 %v219
    %v221 = vlaneseq
    %v222 = vshrl.u32 %v221, 7
    %v223 = vsub.s32 %v220, %v222
    %v224 = vrot.slane %v217, %v223
    %v226 = vsub.f32 %v205, %v224
    %v227 = vlaneseq
    %v228 = vshrl.u32 %v227, 7
    %v229 = vsub.s32 0, %v228
    %v230 = vrot.slane %v202, %v229
    %v231 = vlaneseq
    %v232 = vshrl.u32 %v231, 7
    %v233 = vsub.s32 0, %v232
    %v234 = vrot.slane %v203, %v233
    %v235 = vmul.f32 %v150, %v230
    %v236 = vmul.f32 %v151, %v234
    %v238 = vlaneseq
    %v239 = vshrl.u32 %v238, 7
    %v240 = vsub.s32 0, %v239
    %v241 = vrot.slane %v226, %v240
    %v242 = vlaneseq
    %v243 = vshrl.u32 %v242, 7
    %v244 = vsub.s32 1, %v243
    %v245 = vrot.slane %v226, %v244
    %v248 = vadd.f32 %v235, %v241
    %v249 = vadd.f32 %v236, %v245
    %v250 = vld [vmem:[#allocation5 + $0x40] sm:$0xff]
    %v251 = vld [vmem:[#allocation5 + $0x50] sm:$0xff]
    %v252 = vld [vmem:[#allocation5 + $0x60] sm:$0xff]
    %v253 = vld [vmem:[#allocation5 + $0x70] sm:$0xff]
    %v254 = vld [vmem:[#allocation5 + $0x80] sm:$0xff]
    %v255 = vld [vmem:[#allocation5 + $0x90] sm:$0xff]
    %v256 = vld [vmem:[#allocation5 + $0xa0] sm:$0xff]
    %v257 = vld [vmem:[#allocation5 + $0xb0] sm:$0xff]
    %v258 = vld [vmem:[#allocation5 + $0xc0] sm:$0xff]
    %v259 = vld [vmem:[#allocation5 + $0xd0] sm:$0xff]
    %v260 = vld [vmem:[#allocation5 + $0xe0] sm:$0xff]
    %v261 = vld [vmem:[#allocation5 + $0xf0] sm:$0xff]
    %v262 = vld [vmem:[#allocation5 + $0x100] sm:$0xff]
    %v263 = vld [vmem:[#allocation5 + $0x110] sm:$0xff]
    %v264 = vld [vmem:[#allocation5 + $0x120] sm:$0xff]
    %v265 = vld [vmem:[#allocation5 + $0x130] sm:$0xff]
    %v266 = vld [vmem:[#allocation5 + $0x140] sm:$0xff]
    %v267 = vld [vmem:[#allocation5 + $0x150] sm:$0xff]
    %v268 = vld [vmem:[#allocation5 + $0x160] sm:$0xff]
    %v269 = vld [vmem:[#allocation5 + $0x170] sm:$0xff]
    %v270 = vld [vmem:[#allocation5 + $0x180] sm:$0xff]
    %v271 = vld [vmem:[#allocation5 + $0x190] sm:$0xff]
    %v272 = vld [vmem:[#allocation5 + $0x1a0] sm:$0xff]
    %v273 = vld [vmem:[#allocation5 + $0x1b0] sm:$0xff]
    %v274 = vld [vmem:[#allocation5 + $0x1c0] sm:$0xff]
    %v275 = vld [vmem:[#allocation5 + $0x1d0] sm:$0xff]
    %v276 = vld [vmem:[#allocation5 + $0x1e0] sm:$0xff]
    %v277 = vld [vmem:[#allocation5 + $0x1f0] sm:$0xff]
    %v278 = vld [vmem:[#allocation5 + $0x200] sm:$0xff]
    %v279 = vld [vmem:[#allocation5 + $0x210] sm:$0xff]
    %v280 = vld [vmem:[#allocation5 + $0x220] sm:$0xff]
    %v281 = vld [vmem:[#allocation5 + $0x230] sm:$0xff]
    %v282 = vld [vmem:[#allocation7 + $0x1] ss:$0 sm:$0xff]
    %283 = vmatprep.subr.mxu0 0.0
    %284 = vmatpush1.msra.mxu0 %v265
    %285 = vmatprep.subr.mxu0 0.0
    %286 = vmatpush1.msra.mxu0 %v264
    %287 = vmatprep.subr.mxu0 0.0
    %288 = vmatpush1.msra.mxu0 %v263
    %289 = vmatprep.subr.mxu0 0.0
    %290 = vmatpush1.msra.mxu0 %v262
    %291 = vmatprep.subr.mxu0 0.0
    %292 = vmatpush1.msra.mxu0 %v261
    %293 = vmatprep.subr.mxu0 0.0
    %294 = vmatpush1.msra.mxu0 %v260
    %295 = vmatprep.subr.mxu0 0.0
    %296 = vmatpush1.msra.mxu0 %v259
    %297 = vmatprep.subr.mxu0 0.0
    %298 = vmatpush1.msra.mxu0 %v258
    %299 = vmatprep.subr.mxu0 0.0
    %300 = vmatpush1.msra.mxu0 %v257
    %301 = vmatprep.subr.mxu0 0.0
    %302 = vmatpush1.msra.mxu0 %v256
    %303 = vmatprep.subr.mxu0 0.0
    %304 = vmatpush1.msra.mxu0 %v255
    %305 = vmatprep.subr.mxu0 0.0
    %306 = vmatpush1.msra.mxu0 %v254
    %307 = vmatprep.subr.mxu0 0.0
    %308 = vmatpush1.msra.mxu0 %v253
    %309 = vmatprep.subr.mxu0 0.0
    %310 = vmatpush1.msra.mxu0 %v252
    %311 = vmatprep.subr.mxu0 0.0
    %312 = vmatpush1.msra.mxu0 %v251
    %313 = vmatprep.subr.mxu0 0.0
    %314 = vmatpush1.msra.mxu0 %v250
    %315 = vmatprep.subr.mxu0 0.0
    %316 = vmatpush2.msra.mxu0 %v281
    %317 = vmatprep.subr.mxu0 0.0
    %318 = vmatpush2.msra.mxu0 %v280
    %319 = vmatprep.subr.mxu0 0.0
    %320 = vmatpush2.msra.mxu0 %v279
    %321 = vmatprep.subr.mxu0 0.0
    %322 = vmatpush2.msra.mxu0 %v278
    %323 = vmatprep.subr.mxu0 0.0
    %324 = vmatpush2.msra.mxu0 %v277
    %325 = vmatprep.subr.mxu0 0.0
    %326 = vmatpush2.msra.mxu0 %v276
    %327 = vmatprep.subr.mxu0 0.0
    %328 = vmatpush2.msra.mxu0 %v275
    %329 = vmatprep.subr.mxu0 0.0
    %330 = vmatpush2.msra.mxu0 %v274
    %331 = vmatprep.subr.mxu0 0.0
    %332 = vmatpush2.msra.mxu0 %v273
    %333 = vmatprep.subr.mxu0 0.0
    %334 = vmatpush2.msra.mxu0 %v272
    %335 = vmatprep.subr.mxu0 0.0
    %336 = vmatpush2.msra.mxu0 %v271
    %337 = vmatprep.subr.mxu0 0.0
    %338 = vmatpush2.msra.mxu0 %v270
    %339 = vmatprep.subr.mxu0 0.0
    %340 = vmatpush2.msra.mxu0 %v269
    %341 = vmatprep.subr.mxu0 0.0
    %342 = vmatpush2.msra.mxu0 %v268
    %343 = vmatprep.subr.mxu0 0.0
    %344 = vmatpush2.msra.mxu0 %v267
    %345 = vmatprep.subr.mxu0 0.0
    %346 = vmatpush2.msra.mxu0 %v266
    %347 = vmatprep.mubr.f32.mxu0 %v249
    %348 = vmatmul.mubr.f32.gmra.mxu0 %v248
    %v349 = vpop.f32.mrf.mxu0
    %v350 = vadd.f32 %v282, %v349
    %v351 = vpop.f32.mrf.mxu0
    %352 = vdwg.mxu0
    %v353 = vmax.f32 %v350, 0.0
    %v354 = vrot.slane %v353, 4
    %v355 = vadd.f32 %v353, %v354
    %v356 = vrot.slane %v355, 2
    %v357 = vadd.f32 %v355, %v356
    %v358 = vrot.slane %v357, 1
    %v359 = vadd.f32 %v357, %v358
    %v360 = vmul.f32 %v359, %v164
    %v361 = vsub.f32 %v353, %v360
    %v362 = vmul.f32 %v361, %v361
    %v363 = vrot.slane %v362, 4
    %v364 = vadd.f32 %v362, %v363
    %v365 = vrot.slane %v364, 2
    %v366 = vadd.f32 %v364, %v365
    %v367 = vrot.slane %v366, 1
    %v368 = vadd.f32 %v366, %v367
    %v369 = vmul.f32 %v368, %v164
    %v370 = vadd.f32 %v369, 1e-05
    %v371 = vrsqrt.pop %v370
    %v372 = vld [vmem:[#allocation7 + $0x6] ss:$0 sm:$0xff]
    %v373 = vmul.f32 %v371, %v372
    %v374 = vld [vmem:[#allocation7 + $0x12] ss:$0 sm:$0xff]
    %v375 = vmul.f32 %v360, %v373
    %v376 = vsub.f32 %v374, %v375
    %v377 = vmul.f32 %v353, %v373
    %v378 = vadd.f32 %v377, %v376
    %v379 = vld [vmem:[#allocation5 + $0x240] sm:$0xff]
    %v380 = vld [vmem:[#allocation5 + $0x250] sm:$0xff]
    %v381 = vld [vmem:[#allocation5 + $0x260] sm:$0xff]
    %v382 = vld [vmem:[#allocation5 + $0x270] sm:$0xff]
    %v383 = vld [vmem:[#allocation5 + $0x280] sm:$0xff]
    %v384 = vld [vmem:[#allocation5 + $0x290] sm:$0xff]
    %v385 = vld [vmem:[#allocation5 + $0x2a0] sm:$0xff]
    %v386 = vld [vmem:[#allocation5 + $0x2b0] sm:$0xff]
    %v387 = vld [vmem:[#allocation5 + $0x2c0] sm:$0xff]
    %v388 = vld [vmem:[#allocation5 + $0x2d0] sm:$0xff]
    %v389 = vld [vmem:[#allocation5 + $0x2e0] sm:$0xff]
    %v390 = vld [vmem:[#allocation5 + $0x2f0] sm:$0xff]
    %v391 = vld [vmem:[#allocation5 + $0x300] sm:$0xff]
    %v392 = vld [vmem:[#allocation5 + $0x310] sm:$0xff]
    %v393 = vld [vmem:[#allocation5 + $0x320] sm:$0xff]
    %v394 = vld [vmem:[#allocation5 + $0x330] sm:$0xff]
    %v395 = vld [vmem:[#allocation7 + $0x2] ss:$0 sm:$0xff]
    %396 = vmatprep.subr.mxu0 0.0
    %397 = vmatpush1.msra.mxu0 %v394
    %398 = vmatprep.subr.mxu0 0.0
    %399 = vmatpush1.msra.mxu0 %v393
    %400 = vmatprep.subr.mxu0 0.0
    %401 = vmatpush1.msra.mxu0 %v392
    %402 = vmatprep.subr.mxu0 0.0
    %403 = vmatpush1.msra.mxu0 %v391
    %404 = vmatprep.subr.mxu0 0.0
    %405 = vmatpush1.msra.mxu0 %v390
    %406 = vmatprep.subr.mxu0 0.0
    %407 = vmatpush1.msra.mxu0 %v389
    %408 = vmatprep.subr.mxu0 0.0
    %409 = vmatpush1.msra.mxu0 %v388
    %410 = vmatprep.subr.mxu0 0.0
    %411 = vmatpush1.msra.mxu0 %v387
    %412 = vmatprep.subr.mxu0 0.0
    %413 = vmatpush1.msra.mxu0 %v386
    %414 = vmatprep.subr.mxu0 0.0
    %415 = vmatpush1.msra.mxu0 %v385
    %416 = vmatprep.subr.mxu0 0.0
    %417 = vmatpush1.msra.mxu0 %v384
    %418 = vmatprep.subr.mxu0 0.0
    %419 = vmatpush1.msra.mxu0 %v383
    %420 = vmatprep.subr.mxu0 0.0
    %421 = vmatpush1.msra.mxu0 %v382
    %422 = vmatprep.subr.mxu0 0.0
    %423 = vmatpush1.msra.mxu0 %v381
    %424 = vmatprep.subr.mxu0 0.0
    %425 = vmatpush1.msra.mxu0 %v380
    %426 = vmatprep.subr.mxu0 0.0
    %427 = vmatpush1.msra.mxu0 %v379
    %428 = vmatprep.subr.mxu0 0.0
    %429 = vmatpush2.msra.mxu0 0.0
    %430 = vmatprep.subr.mxu0 0.0
    %431 = vmatpush2.msra.mxu0 0.0
    %432 = vmatprep.subr.mxu0 0.0
    %433 = vmatpush2.msra.mxu0 0.0
    %434 = vmatprep.subr.mxu0 0.0
    %435 = vmatpush2.msra.mxu0 0.0
    %436 = vmatprep.subr.mxu0 0.0
    %437 = vmatpush2.msra.mxu0 0.0
    %438 = vmatprep.subr.mxu0 0.0
    %439 = vmatpush2.msra.mxu0 0.0
    %440 = vmatprep.subr.mxu0 0.0
    %441 = vmatpush2.msra.mxu0 0.0
    %442 = vmatprep.subr.mxu0 0.0
    %443 = vmatpush2.msra.mxu0 0.0
    %444 = vmatprep.subr.mxu0 0.0
    %445 = vmatpush2.msra.mxu0 0.0
    %446 = vmatprep.subr.mxu0 0.0
    %447 = vmatpush2.msra.mxu0 0.0
    %448 = vmatprep.subr.mxu0 0.0
    %449 = vmatpush2.msra.mxu0 0.0
    %450 = vmatprep.subr.mxu0 0.0
    %451 = vmatpush2.msra.mxu0 0.0
    %452 = vmatprep.subr.mxu0 0.0
    %453 = vmatpush2.msra.mxu0 0.0
    %454 = vmatprep.subr.mxu0 0.0
    %455 = vmatpush2.msra.mxu0 0.0
    %456 = vmatprep.subr.mxu0 0.0
    %457 = vmatpush2.msra.mxu0 0.0
    %458 = vmatprep.subr.mxu0 0.0
    %459 = vmatpush2.msra.mxu0 0.0
    %460 = vmatprep.mubr.f32.mxu0 0.0
    %461 = vmatmul.mubr.f32.gmra.mxu0 %v378
    %v462 = vpop.f32.mrf.mxu0
    %v463 = vadd.f32 %v395, %v462
    %v464 = vpop.f32.mrf.mxu0
    %465 = vdwg.mxu0
    %v466 = vmax.f32 %v463, 0.0
    %vm467 = vcmask 523264
    %v468 = vsel %vm467, %v466, 0.0
    %v469 = vrot.slane %v468, 4
    %v470 = vadd.f32 %v468, %v469
    %v471 = vrot.slane %v470, 2
    %v472 = vadd.f32 %v470, %v471
    %v473 = vrot.slane %v472, 1
    %v474 = vadd.f32 %v472, %v473
    %v475 = vmul.f32 %v474, %v164
    %v476 = vsub.f32 %v466, %v475
    %v477 = vmul.f32 %v476, %v476
    %v478 = vsel %vm467, %v477, 0.0
    %v479 = vrot.slane %v478, 4
    %v480 = vadd.f32 %v478, %v479
    %v481 = vrot.slane %v480, 2
    %v482 = vadd.f32 %v480, %v481
    %v483 = vrot.slane %v482, 1
    %v484 = vadd.f32 %v482, %v483
    %v485 = vmul.f32 %v484, %v164
    %v486 = vadd.f32 %v485, 1e-05
    %v487 = vrsqrt.pop %v486
    %v488 = vld [vmem:[#allocation7 + $0x7] ss:$0 sm:$0xff]
    %v489 = vmul.f32 %v487, %v488
    %v490 = vld [vmem:[#allocation7 + $0x13] ss:$0 sm:$0xff]
    %v491 = vmul.f32 %v475, %v489
    %v492 = vsub.f32 %v490, %v491
    %v493 = vmul.f32 %v466, %v489
    %v494 = vadd.f32 %v493, %v492
    %v495 = vld [vmem:[#allocation5 + $0x340] sm:$0xff]
    %v496 = vld [vmem:[#allocation5 + $0x350] sm:$0xff]
    %v497 = vld [vmem:[#allocation5 + $0x360] sm:$0xff]
    %v498 = vld [vmem:[#allocation5 + $0x370] sm:$0xff]
    %v499 = vld [vmem:[#allocation5 + $0x380] sm:$0xff]
    %v500 = vld [vmem:[#allocation5 + $0x390] sm:$0xff]
    %v501 = vld [vmem:[#allocation5 + $0x3a0] sm:$0xff]
    %v502 = vld [vmem:[#allocation5 + $0x3b0] sm:$0xff]
    %v503 = vld [vmem:[#allocation7 + $0x3] ss:$0 sm:$0xff]
    %v505 = vsel %vm467, %v494, 0
    %507 = vmatprep.subr.mxu0 0.0
    %508 = vmatpush1.msra.mxu0 0.0
    %509 = vmatprep.subr.mxu0 0.0
    %510 = vmatpush1.msra.mxu0 0.0
    %511 = vmatprep.subr.mxu0 0.0
    %512 = vmatpush1.msra.mxu0 0.0
    %513 = vmatprep.subr.mxu0 0.0
    %514 = vmatpush1.msra.mxu0 0.0
    %515 = vmatprep.subr.mxu0 0.0
    %516 = vmatpush1.msra.mxu0 0.0
    %517 = vmatprep.subr.mxu0 0.0
    %518 = vmatpush1.msra.mxu0 0.0
    %519 = vmatprep.subr.mxu0 0.0
    %520 = vmatpush1.msra.mxu0 0.0
    %521 = vmatprep.subr.mxu0 0.0
    %522 = vmatpush1.msra.mxu0 0.0
    %523 = vmatprep.subr.mxu0 0.0
    %524 = vmatpush1.msra.mxu0 %v502
    %525 = vmatprep.subr.mxu0 0.0
    %526 = vmatpush1.msra.mxu0 %v501
    %527 = vmatprep.subr.mxu0 0.0
    %528 = vmatpush1.msra.mxu0 %v500
    %529 = vmatprep.subr.mxu0 0.0
    %530 = vmatpush1.msra.mxu0 %v499
    %531 = vmatprep.subr.mxu0 0.0
    %532 = vmatpush1.msra.mxu0 %v498
    %533 = vmatprep.subr.mxu0 0.0
    %534 = vmatpush1.msra.mxu0 %v497
    %535 = vmatprep.subr.mxu0 0.0
    %536 = vmatpush1.msra.mxu0 %v496
    %537 = vmatprep.subr.mxu0 0.0
    %538 = vmatpush1.msra.mxu0 %v495
    %539 = vmatprep.subr.mxu0 0.0
    %540 = vmatpush2.msra.mxu0 0.0
    %541 = vmatprep.subr.mxu0 0.0
    %542 = vmatpush2.msra.mxu0 0.0
    %543 = vmatprep.subr.mxu0 0.0
    %544 = vmatpush2.msra.mxu0 0.0
    %545 = vmatprep.subr.mxu0 0.0
    %546 = vmatpush2.msra.mxu0 0.0
    %547 = vmatprep.subr.mxu0 0.0
    %548 = vmatpush2.msra.mxu0 0.0
    %549 = vmatprep.subr.mxu0 0.0
    %550 = vmatpush2.msra.mxu0 0.0
    %551 = vmatprep.subr.mxu0 0.0
    %552 = vmatpush2.msra.mxu0 0.0
    %553 = vmatprep.subr.mxu0 0.0
    %554 = vmatpush2.msra.mxu0 0.0
    %555 = vmatprep.subr.mxu0 0.0
    %556 = vmatpush2.msra.mxu0 0.0
    %557 = vmatprep.subr.mxu0 0.0
    %558 = vmatpush2.msra.mxu0 0.0
    %559 = vmatprep.subr.mxu0 0.0
    %560 = vmatpush2.msra.mxu0 0.0
    %561 = vmatprep.subr.mxu0 0.0
    %562 = vmatpush2.msra.mxu0 0.0
    %563 = vmatprep.subr.mxu0 0.0
    %564 = vmatpush2.msra.mxu0 0.0
    %565 = vmatprep.subr.mxu0 0.0
    %566 = vmatpush2.msra.mxu0 0.0
    %567 = vmatprep.subr.mxu0 0.0
    %568 = vmatpush2.msra.mxu0 0.0
    %569 = vmatprep.subr.mxu0 0.0
    %570 = vmatpush2.msra.mxu0 0.0
    %571 = vmatprep.mubr.f32.mxu0 0.0
    %572 = vmatmul.mubr.f32.gmra.mxu0 %v505
    %v573 = vpop.f32.mrf.mxu0
    %v574 = vadd.f32 %v503, %v573
    %v575 = vpop.f32.mrf.mxu0
    %576 = vdwg.mxu0
    %v577 = vmax.f32 %v574, 0.0
    %v578 = vsel %vm75, %v577, 0.0
    %v579 = vrot.slane %v578, 4
    %v580 = vadd.f32 %v578, %v579
    %v581 = vrot.slane %v580, 2
    %v582 = vadd.f32 %v580, %v581
    %v583 = vrot.slane %v582, 1
    %v584 = vadd.f32 %v582, %v583
    %v585 = vmul.f32 %v584, %v164
    %v586 = vsub.f32 %v577, %v585
    %v587 = vmul.f32 %v586, %v586
    %v588 = vsel %vm75, %v587, 0.0
    %v589 = vrot.slane %v588, 4
    %v590 = vadd.f32 %v588, %v589
    %v591 = vrot.slane %v590, 2
    %v592 = vadd.f32 %v590, %v591
    %v593 = vrot.slane %v592, 1
    %v594 = vadd.f32 %v592, %v593
    %v595 = vmul.f32 %v594, %v164
    %v596 = vadd.f32 %v595, 1e-05
    %v597 = vrsqrt.pop %v596
    %v598 = vld [vmem:[#allocation7 + $0x10] ss:$0 sm:$0xff]
    %v599 = vmul.f32 %v597, %v598
    %v600 = vld [vmem:[#allocation7 + $0x14] ss:$0 sm:$0xff]
    %v601 = vmul.f32 %v585, %v599
    %v602 = vsub.f32 %v600, %v601
    %v603 = vmul.f32 %v577, %v599
    %v604 = vadd.f32 %v603, %v602
    %v605 = vld [vmem:[#allocation5 + $0x3c0] sm:$0xff]
    %v606 = vld [vmem:[#allocation5 + $0x3d0] sm:$0xff]
    %v607 = vld [vmem:[#allocation5 + $0x3e0] sm:$0xff]
    %v608 = vld [vmem:[#allocation5 + $0x3f0] sm:$0xff]
    %v609 = vld [vmem:[#allocation7 + $0x4] ss:$0 sm:$0xff]
    %v611 = vsel %vm75, %v604, 0
    %613 = vmatprep.subr.mxu0 0.0
    %614 = vmatpush1.msra.mxu0 0.0
    %615 = vmatprep.subr.mxu0 0.0
    %616 = vmatpush1.msra.mxu0 0.0
    %617 = vmatprep.subr.mxu0 0.0
    %618 = vmatpush1.msra.mxu0 0.0
    %619 = vmatprep.subr.mxu0 0.0
    %620 = vmatpush1.msra.mxu0 0.0
    %621 = vmatprep.subr.mxu0 0.0
    %622 = vmatpush1.msra.mxu0 0.0
    %623 = vmatprep.subr.mxu0 0.0
    %624 = vmatpush1.msra.mxu0 0.0
    %625 = vmatprep.subr.mxu0 0.0
    %626 = vmatpush1.msra.mxu0 0.0
    %627 = vmatprep.subr.mxu0 0.0
    %628 = vmatpush1.msra.mxu0 0.0
    %629 = vmatprep.subr.mxu0 0.0
    %630 = vmatpush1.msra.mxu0 0.0
    %631 = vmatprep.subr.mxu0 0.0
    %632 = vmatpush1.msra.mxu0 0.0
    %633 = vmatprep.subr.mxu0 0.0
    %634 = vmatpush1.msra.mxu0 0.0
    %635 = vmatprep.subr.mxu0 0.0
    %636 = vmatpush1.msra.mxu0 0.0
    %637 = vmatprep.subr.mxu0 0.0
    %638 = vmatpush1.msra.mxu0 %v608
    %639 = vmatprep.subr.mxu0 0.0
    %640 = vmatpush1.msra.mxu0 %v607
    %641 = vmatprep.subr.mxu0 0.0
    %642 = vmatpush1.msra.mxu0 %v606
    %643 = vmatprep.subr.mxu0 0.0
    %644 = vmatpush1.msra.mxu0 %v605
    %645 = vmatprep.subr.mxu0 0.0
    %646 = vmatpush2.msra.mxu0 0.0
    %647 = vmatprep.subr.mxu0 0.0
    %648 = vmatpush2.msra.mxu0 0.0
    %649 = vmatprep.subr.mxu0 0.0
    %650 = vmatpush2.msra.mxu0 0.0
    %651 = vmatprep.subr.mxu0 0.0
    %652 = vmatpush2.msra.mxu0 0.0
    %653 = vmatprep.subr.mxu0 0.0
    %654 = vmatpush2.msra.mxu0 0.0
    %655 = vmatprep.subr.mxu0 0.0
    %656 = vmatpush2.msra.mxu0 0.0
    %657 = vmatprep.subr.mxu0 0.0
    %658 = vmatpush2.msra.mxu0 0.0
    %659 = vmatprep.subr.mxu0 0.0
    %660 = vmatpush2.msra.mxu0 0.0
    %661 = vmatprep.subr.mxu0 0.0
    %662 = vmatpush2.msra.mxu0 0.0
    %663 = vmatprep.subr.mxu0 0.0
    %664 = vmatpush2.msra.mxu0 0.0
    %665 = vmatprep.subr.mxu0 0.0
    %666 = vmatpush2.msra.mxu0 0.0
    %667 = vmatprep.subr.mxu0 0.0
    %668 = vmatpush2.msra.mxu0 0.0
    %669 = vmatprep.subr.mxu0 0.0
    %670 = vmatpush2.msra.mxu0 0.0
    %671 = vmatprep.subr.mxu0 0.0
    %672 = vmatpush2.msra.mxu0 0.0
    %673 = vmatprep.subr.mxu0 0.0
    %674 = vmatpush2.msra.mxu0 0.0
    %675 = vmatprep.subr.mxu0 0.0
    %676 = vmatpush2.msra.mxu0 0.0
    %677 = vmatprep.mubr.f32.mxu0 0.0
    %678 = vmatmul.mubr.f32.gmra.mxu0 %v611
    %v679 = vpop.f32.mrf.mxu0
    %v680 = vadd.f32 %v609, %v679
    %v681 = vpop.f32.mrf.mxu0
    %682 = vdwg.mxu0
    %683 = vst [vmem:[#allocation8] sm:$0xff] %v680
    // Predicated region
    $region26: #{tpu_custom_call.1} parent=1 // pred_check
      _
    $region27: #{tpu_custom_call.1} parent=1 // pred_check_branch
      %685 = sbr.rel (0) target = $region29
    $region28: #{tpu_custom_call.1} parent=1 // pred_region
      %s687 = ssub.s32 128, 128
      %688 = vsyncadd [#allocation4], %s687
      %s690 = sshll.u32 [#allocation8], 4
      %s691 = int_to_ptr.vmem [resolvable:$true] %s690
      %693 = dma.vmem_to_hbm [thread:$0]  %s691, 128, %s3, [#allocation4]
    $region29: #{tpu_custom_call.1} parent=1 // pred_fallthru
      _
    // Predicated region
    $region30: #{tpu_custom_call.1} parent=1 // pred_check
      _
    $region31: #{tpu_custom_call.1} parent=1 // pred_check_branch
      %695 = sbr.rel (0) target = $region33
    $region32: #{tpu_custom_call.1} parent=1 // pred_region
      %696 = dma.done [#allocation4], 128
    $region33: #{tpu_custom_call.1} parent=1 // pred_fallthru
      _
    %697 = vsyncpa [#allocation3], 1
    %698 = vsyncpa [#allocation6], 1
    %699 = vsyncpa [#allocation4], 1

</llo_original>
